<compile_context>
chip_gen: v6e
topology: v6e:2x2x1
jax: 0.10.0
libtpu: 0.0.40
codegen_flags: <defaults>
</compile_context>

<pallas_src>
import functools

import jax
import jax.numpy as jnp
from jax.experimental import pallas as pl
from jax.experimental.pallas import tpu as pltpu

_LANE = 128
_SUBLANE = 8
_MAX_LANE_TILE = 2048      # lanes; tiles >=512 already reach ~85% of HBM roofline
_CHUNK_MAX = 512           # lanes; keeps per-(batch,chunk) accumulators vreg-resident
_MAX_CIN_BLOCK = 16        # channels contracted per step along the "arbitrary" axis


def _round_up(x, m):
    return ((x + m - 1) // m) * m


def _vmem_capacity_bytes():
    try:
        return int(pltpu.get_tpu_info().vmem_capacity_bytes)
    except Exception:
        return 64 * 1024 * 1024   # conservative fallback: v7x per-TensorCore VMEM


def _choose_lane_tile(batch, cin_block, cout_p, lpad, workset_budget):
    """Largest multiple-of-128 divisor of lpad that fits the (double-buffered)
    VMEM workset budget and still leaves >=2 (>=4 when possible) grid steps."""
    n128 = lpad // _LANE
    # f32 bytes per lane column of one grid step (x + w + out tiles).
    bytes_per_lane = 4 * (2 * batch * cin_block
                          + 2 * cin_block * cout_p
                          + 2 * batch * cout_p)
    budget_units = max(1, workset_budget // (2 * bytes_per_lane * _LANE))
    cap_units = min(budget_units, _MAX_LANE_TILE // _LANE)
    min_grid = 1
    if n128 >= 2:
        min_grid = 2          # enable BlockSpec double-buffering
    if n128 >= 4:
        min_grid = 4          # 2 TensorCores (v7x) x >=2 pipelined steps each
    best = 1
    for d in range(1, n128 + 1):
        if n128 % d == 0 and d <= cap_units and (n128 // d) >= min_grid:
            best = d
    return best * _LANE


def _choose_chunk(lane_tile):
    """Largest multiple of 128 that divides lane_tile and is <= _CHUNK_MAX."""
    units = lane_tile // _LANE
    best = 1
    for g in range(1, units + 1):
        if units % g == 0 and g * _LANE <= _CHUNK_MAX:
            best = g
    return best * _LANE


def _spectral_mul_kernel(x_ref, w_ref, o_ref, *, chunk, cin_active):
    # x_ref: (2, B, Cb, Lt)         [0]=Re(x_ft), [1]=Im(x_ft)   (Cb = Cin block)
    # w_ref: (2, Cb, Cout_pad, Lt)  [0]=Re(w),    [1]=Im(w)
    # o_ref: (2, B, Cout_pad, Lt)   [0]=Re(out),  [1]=Im(out); revisited over Cin blocks
    batch = x_ref.shape[1]
    cout_p = w_ref.shape[2]
    lt = x_ref.shape[3]

    @pl.when(pl.program_id(1) == 0)
    def _init():
        o_ref[...] = jnp.zeros_like(o_ref)

    # Lane-chunk loop keeps the accumulators small enough to stay in vregs; the
    # output ref is read/written only once per chunk (per Cin block).
    for c in range(lt // chunk):
        sl = slice(c * chunk, (c + 1) * chunk)
        for b in range(batch):
            acc_r = jnp.zeros((cout_p, chunk), jnp.float32)
            acc_i = jnp.zeros((cout_p, chunk), jnp.float32)
            for i in range(cin_active):
                # (1, chunk) x rows broadcast against (Cout_pad, chunk) weights.
                xr = x_ref[0, b, i:i + 1, sl]
                xi = x_ref[1, b, i:i + 1, sl]
                wr = w_ref[0, i, :, sl]
                wi = w_ref[1, i, :, sl]
                acc_r = acc_r + (xr * wr - xi * wi)
                acc_i = acc_i + (xr * wi + xi * wr)
            o_ref[0, b, :, sl] += acc_r
            o_ref[1, b, :, sl] += acc_i


def _spectral_corner_contract(x_corners, w_corners):
    """x_corners: list of complex64 (B, Cin, m1, m2, m3) spectral blocks.
       w_corners: list of complex64 (Cin, Cout, m1, m2, m3) weights.
       Returns list of complex64 (B, Cout, m1, m2, m3): einsum('bixyz,ioxyz->boxyz')."""
    B, Cin, m1, m2, m3 = x_corners[0].shape
    Cout = w_corners[0].shape[1]
    M = m1 * m2 * m3
    ncor = len(x_corners)
    L = ncor * M

    cout_p = _round_up(Cout, _SUBLANE)

    # Cin blocking: single sublane-padded block for small channel counts (the
    # zero-padded channels are skipped in-kernel); 16-channel blocks otherwise.
    cin_p8 = _round_up(Cin, _SUBLANE)
    if cin_p8 <= _MAX_CIN_BLOCK:
        cin_block = cin_p8
        cin_p = cin_p8
        cin_active = Cin
    else:
        cin_block = _MAX_CIN_BLOCK
        cin_p = _round_up(Cin, cin_block)
        cin_active = cin_block
    cin_blocks = cin_p // cin_block

    vmem_cap = _vmem_capacity_bytes()
    workset_budget = vmem_cap // 4
    vmem_limit = vmem_cap // 2

    # Pad the fused lane axis to 128 first, then tile it with a divisor of Lpad.
    lpad = _round_up(L, _LANE)
    lane_tile = _choose_lane_tile(B, cin_block, cout_p, lpad, workset_budget)
    grid_n = lpad // lane_tile
    chunk = _choose_chunk(lane_tile)

    # Pack x: (2, B, Cin_pad, Lpad) -- corners fused onto the lane axis.
    x_flat = jnp.concatenate([c.reshape(B, Cin, M) for c in x_corners], axis=-1)
    x_ri = jnp.stack([jnp.real(x_flat), jnp.imag(x_flat)], axis=0).astype(jnp.float32)
    x_ri = jnp.pad(x_ri, ((0, 0), (0, 0), (0, cin_p - Cin), (0, lpad - L)))

    # Pack w: (2, Cin_pad, Cout_pad, Lpad) -- only Re/Im planes (minimal HBM bytes).
    w_flat = jnp.concatenate([w.reshape(Cin, Cout, M) for w in w_corners], axis=-1)
    w_ri = jnp.stack([jnp.real(w_flat), jnp.imag(w_flat)], axis=0).astype(jnp.float32)
    w_ri = jnp.pad(w_ri, ((0, 0), (0, cin_p - Cin), (0, cout_p - Cout), (0, lpad - L)))

    kernel = functools.partial(_spectral_mul_kernel, chunk=chunk, cin_active=cin_active)
    out = pl.pallas_call(
        kernel,
        out_shape=jax.ShapeDtypeStruct((2, B, cout_p, lpad), jnp.float32),
        grid_spec=pltpu.PrefetchScalarGridSpec(
            num_scalar_prefetch=0,
            grid=(grid_n, cin_blocks),              # reduction (Cin) axis last
            in_specs=[
                pl.BlockSpec((2, B, cin_block, lane_tile), lambda l, k: (0, 0, k, l)),
                pl.BlockSpec((2, cin_block, cout_p, lane_tile), lambda l, k: (0, k, 0, l)),
            ],
            out_specs=pl.BlockSpec((2, B, cout_p, lane_tile), lambda l, k: (0, 0, 0, l)),
        ),
        compiler_params=pltpu.CompilerParams(
            dimension_semantics=("parallel", "arbitrary"),
            vmem_limit_bytes=vmem_limit,
        ),
    )(x_ri, w_ri)

    out_c = (out[0, :, :Cout, :L] + 1j * out[1, :, :Cout, :L]).astype(jnp.complex64)
    return [out_c[:, :, k * M:(k + 1) * M].reshape(B, Cout, m1, m2, m3)
            for k in range(ncor)]


class SpectralConv3dPallas:
    def __init__(self, in_channels, out_channels, modes1, modes2, modes3,
                 scale_fac=1.0, key=None):
        self.in_channels = in_channels
        self.out_channels = out_channels
        self.modes1 = modes1
        self.modes2 = modes2
        self.modes3 = modes3
        self.scale = scale_fac / (in_channels * out_channels)

        if key is None:
            key = jax.random.PRNGKey(0)
        keys = jax.random.split(key, 8)
        shape = (in_channels, out_channels, modes1, modes2, modes3)

        def cplx_normal(kr, ki):
            # torch.randn(..., dtype=cfloat): real & imag each ~ N(0, 1/2)
            re = jax.random.normal(kr, shape, dtype=jnp.float32) / jnp.sqrt(2.0)
            im = jax.random.normal(ki, shape, dtype=jnp.float32) / jnp.sqrt(2.0)
            return (re + 1j * im).astype(jnp.complex64)

        self.weights1 = self.scale * cplx_normal(keys[0], keys[1])
        self.weights2 = self.scale * cplx_normal(keys[2], keys[3])
        self.weights3 = self.scale * cplx_normal(keys[4], keys[5])
        self.weights4 = self.scale * cplx_normal(keys[6], keys[7])

    def __call__(self, x):
        # x: (B, Cin, D1, D2, D3) float32
        B, Cin, D1, D2, D3 = x.shape
        m1, m2, m3 = self.modes1, self.modes2, self.modes3
        Cout = self.out_channels
        D3f = D3 // 2 + 1

        x_ft = jnp.fft.rfftn(x, axes=(-3, -2, -1))  # (B, Cin, D1, D2, D3f) complex64

        corners = [
            x_ft[:, :, :m1, :m2, :m3],
            x_ft[:, :, -m1:, :m2, :m3],
            x_ft[:, :, :m1, -m2:, :m3],
            x_ft[:, :, -m1:, -m2:, :m3],
        ]
        weights = [self.weights1, self.weights2, self.weights3, self.weights4]

        out_corners = _spectral_corner_contract(corners, weights)

        out_ft = jnp.zeros((B, Cout, D1, D2, D3f), dtype=jnp.complex64)
        out_ft = out_ft.at[:, :, :m1, :m2, :m3].set(out_corners[0])
        out_ft = out_ft.at[:, :, -m1:, :m2, :m3].set(out_corners[1])
        out_ft = out_ft.at[:, :, :m1, -m2:, :m3].set(out_corners[2])
        out_ft = out_ft.at[:, :, -m1:, -m2:, :m3].set(out_corners[3])

        return jnp.fft.irfftn(out_ft, s=(D1, D2, D3), axes=(-3, -2, -1))


def _reference_forward(x, layer):
    B, Cin, D1, D2, D3 = x.shape
    m1, m2, m3 = layer.modes1, layer.modes2, layer.modes3
    Cout = layer.out_channels
    D3f = D3 // 2 + 1
    x_ft = jnp.fft.rfftn(x, axes=(-3, -2, -1))
    out_ft = jnp.zeros((B, Cout, D1, D2, D3f), dtype=jnp.complex64)
    out_ft = out_ft.at[:, :, :m1, :m2, :m3].set(
        jnp.einsum('bixyz,ioxyz->boxyz', x_ft[:, :, :m1, :m2, :m3], layer.weights1))
    out_ft = out_ft.at[:, :, -m1:, :m2, :m3].set(
        jnp.einsum('bixyz,ioxyz->boxyz', x_ft[:, :, -m1:, :m2, :m3], layer.weights2))
    out_ft = out_ft.at[:, :, :m1, -m2:, :m3].set(
        jnp.einsum('bixyz,ioxyz->boxyz', x_ft[:, :, :m1, -m2:, :m3], layer.weights3))
    out_ft = out_ft.at[:, :, -m1:, -m2:, :m3].set(
        jnp.einsum('bixyz,ioxyz->boxyz', x_ft[:, :, -m1:, -m2:, :m3], layer.weights4))
    return jnp.fft.irfftn(out_ft, s=(D1, D2, D3), axes=(-3, -2, -1))


if __name__ == "__main__":
    key = jax.random.PRNGKey(0)
    k_x, k_w = jax.random.split(key)

    B, Cin, Cout = 2, 4, 4
    D1 = D2 = D3 = 16
    m1, m2, m3 = 4, 4, 3

    x = jax.random.normal(k_x, (B, Cin, D1, D2, D3), dtype=jnp.float32)

    layer = SpectralConv3dPallas(Cin, Cout, m1, m2, m3, scale_fac=1.0, key=k_w)
    y = jax.block_until_ready(layer(x))
    assert y.shape == (B, Cout, D1, D2, D3), y.shape

    # --- numerical check 1: Pallas corner contraction vs pure-JAX einsum
    x_ft = jnp.fft.rfftn(x, axes=(-3, -2, -1))
    corners = [
        x_ft[:, :, :m1, :m2, :m3],
        x_ft[:, :, -m1:, :m2, :m3],
        x_ft[:, :, :m1, -m2:, :m3],
        x_ft[:, :, -m1:, -m2:, :m3],
    ]
    ws = [layer.weights1, layer.weights2, layer.weights3, layer.weights4]
    out_k = _spectral_corner_contract(corners, ws)
    for c, w, o in zip(corners, ws, out_k):
        ref = jnp.einsum('bixyz,ioxyz->boxyz', c, w)
        assert jnp.allclose(ref, o, atol=1e-3, rtol=1e-3)

    # --- numerical check 2: full forward vs pure-JAX reference
    y_ref = _reference_forward(x, layer)
    assert jnp.allclose(y, y_ref, atol=1e-3, rtol=1e-3)

    print("KERNEL_OK")
</pallas_src>

<mosaic_0001>
module attributes {stable_mosaic.version = 11 : i64} {
  func.func @_spectral_mul_kernel(%arg0: i32, %arg1: i32, %arg2: memref<2x2x8x128xf32, #tpu.memory_space<vmem>>, %arg3: memref<2x8x8x128xf32, #tpu.memory_space<vmem>>, %arg4: memref<2x2x8x128xf32, #tpu.memory_space<vmem>>) attributes {dimension_semantics = [#tpu.dimension_semantics<parallel>, #tpu.dimension_semantics<arbitrary>], iteration_bounds = array<i64: 2, 1>, scalar_prefetch = 0 : i64, scratch_operands = 0 : i64, tpu.core_type = #tpu.core_type<tc>, window_params = [{transform_indices = @transform_0, window_bounds = array<i64: 2, 2, 8, 128>}, {transform_indices = @transform_1, window_bounds = array<i64: 2, 8, 8, 128>}, {transform_indices = @transform_2, window_bounds = array<i64: 2, 2, 8, 128>}]} {
    %c0_i32 = arith.constant 0 : i32
    %0 = arith.cmpi eq, %arg1, %c0_i32 : i32
    %1 = arith.extui %0 : i1 to i32
    %c0_i32_0 = arith.constant 0 : i32
    %2 = arith.cmpi ne, %1, %c0_i32_0 : i32
    scf.if %2 {
      %cst_160 = arith.constant 0.000000e+00 : f32
      %191 = vector.broadcast %cst_160 : f32 to vector<2x2x8x128xf32>
      %c0_161 = arith.constant 0 : index
      %c0_162 = arith.constant 0 : index
      %c0_163 = arith.constant 0 : index
      %c0_164 = arith.constant 0 : index
      %192 = vector.load %arg4[%c0_161, %c0_162, %c0_163, %c0_164] : memref<2x2x8x128xf32, #tpu.memory_space<vmem>>, vector<2x2x8x128xf32>
      tpu.vector_store %arg4[%c0_161, %c0_162, %c0_163, %c0_164], %191 {strides = array<i32>} : memref<2x2x8x128xf32, #tpu.memory_space<vmem>>, vector<2x2x8x128xf32>,
    } else {
    }
    %cst = arith.constant 0.000000e+00 : f32
    %3 = vector.broadcast %cst : f32 to vector<8x128xf32>
    %cst_1 = arith.constant 0.000000e+00 : f32
    %4 = vector.broadcast %cst_1 : f32 to vector<8x128xf32>
    %c0 = arith.constant 0 : index
    %c0_2 = arith.constant 0 : index
    %c0_3 = arith.constant 0 : index
    %c0_4 = arith.constant 0 : index
    %5 = vector.load %arg2[%c0, %c0_2, %c0_3, %c0_4] : memref<2x2x8x128xf32, #tpu.memory_space<vmem>>, vector<1x1x1x128xf32>
    %6 = vector.shape_cast %5 : vector<1x1x1x128xf32> to vector<1x128xf32>
    %c1 = arith.constant 1 : index
    %c0_5 = arith.constant 0 : index
    %c0_6 = arith.constant 0 : index
    %c0_7 = arith.constant 0 : index
    %7 = vector.load %arg2[%c1, %c0_5, %c0_6, %c0_7] : memref<2x2x8x128xf32, #tpu.memory_space<vmem>>, vector<1x1x1x128xf32>
    %8 = vector.shape_cast %7 : vector<1x1x1x128xf32> to vector<1x128xf32>
    %c0_8 = arith.constant 0 : index
    %c0_9 = arith.constant 0 : index
    %c0_10 = arith.constant 0 : index
    %c0_11 = arith.constant 0 : index
    %9 = vector.load %arg3[%c0_8, %c0_9, %c0_10, %c0_11] : memref<2x8x8x128xf32, #tpu.memory_space<vmem>>, vector<1x1x8x128xf32>
    %10 = vector.shape_cast %9 : vector<1x1x8x128xf32> to vector<8x128xf32>
    %c1_12 = arith.constant 1 : index
    %c0_13 = arith.constant 0 : index
    %c0_14 = arith.constant 0 : index
    %c0_15 = arith.constant 0 : index
    %11 = vector.load %arg3[%c1_12, %c0_13, %c0_14, %c0_15] : memref<2x8x8x128xf32, #tpu.memory_space<vmem>>, vector<1x1x8x128xf32>
    %12 = vector.shape_cast %11 : vector<1x1x8x128xf32> to vector<8x128xf32>
    %13 = vector.broadcast %6 : vector<1x128xf32> to vector<8x128xf32>
    %14 = arith.mulf %13, %10 : vector<8x128xf32>
    %15 = vector.broadcast %8 : vector<1x128xf32> to vector<8x128xf32>
    %16 = arith.mulf %15, %12 : vector<8x128xf32>
    %17 = arith.subf %14, %16 : vector<8x128xf32>
    %18 = arith.addf %3, %17 : vector<8x128xf32>
    %19 = vector.broadcast %6 : vector<1x128xf32> to vector<8x128xf32>
    %20 = arith.mulf %19, %12 : vector<8x128xf32>
    %21 = vector.broadcast %8 : vector<1x128xf32> to vector<8x128xf32>
    %22 = arith.mulf %21, %10 : vector<8x128xf32>
    %23 = arith.addf %20, %22 : vector<8x128xf32>
    %24 = arith.addf %4, %23 : vector<8x128xf32>
    %c0_16 = arith.constant 0 : index
    %c0_17 = arith.constant 0 : index
    %c1_18 = arith.constant 1 : index
    %c0_19 = arith.constant 0 : index
    %25 = vector.load %arg2[%c0_16, %c0_17, %c1_18, %c0_19] : memref<2x2x8x128xf32, #tpu.memory_space<vmem>>, vector<1x1x1x128xf32>
    %26 = vector.shape_cast %25 : vector<1x1x1x128xf32> to vector<1x128xf32>
    %c1_20 = arith.constant 1 : index
    %c0_21 = arith.constant 0 : index
    %c1_22 = arith.constant 1 : index
    %c0_23 = arith.constant 0 : index
    %27 = vector.load %arg2[%c1_20, %c0_21, %c1_22, %c0_23] : memref<2x2x8x128xf32, #tpu.memory_space<vmem>>, vector<1x1x1x128xf32>
    %28 = vector.shape_cast %27 : vector<1x1x1x128xf32> to vector<1x128xf32>
    %c0_24 = arith.constant 0 : index
    %c1_25 = arith.constant 1 : index
    %c0_26 = arith.constant 0 : index
    %c0_27 = arith.constant 0 : index
    %29 = vector.load %arg3[%c0_24, %c1_25, %c0_26, %c0_27] : memref<2x8x8x128xf32, #tpu.memory_space<vmem>>, vector<1x1x8x128xf32>
    %30 = vector.shape_cast %29 : vector<1x1x8x128xf32> to vector<8x128xf32>
    %c1_28 = arith.constant 1 : index
    %c1_29 = arith.constant 1 : index
    %c0_30 = arith.constant 0 : index
    %c0_31 = arith.constant 0 : index
    %31 = vector.load %arg3[%c1_28, %c1_29, %c0_30, %c0_31] : memref<2x8x8x128xf32, #tpu.memory_space<vmem>>, vector<1x1x8x128xf32>
    %32 = vector.shape_cast %31 : vector<1x1x8x128xf32> to vector<8x128xf32>
    %33 = vector.broadcast %26 : vector<1x128xf32> to vector<8x128xf32>
    %34 = arith.mulf %33, %30 : vector<8x128xf32>
    %35 = vector.broadcast %28 : vector<1x128xf32> to vector<8x128xf32>
    %36 = arith.mulf %35, %32 : vector<8x128xf32>
    %37 = arith.subf %34, %36 : vector<8x128xf32>
    %38 = arith.addf %18, %37 : vector<8x128xf32>
    %39 = vector.broadcast %26 : vector<1x128xf32> to vector<8x128xf32>
    %40 = arith.mulf %39, %32 : vector<8x128xf32>
    %41 = vector.broadcast %28 : vector<1x128xf32> to vector<8x128xf32>
    %42 = arith.mulf %41, %30 : vector<8x128xf32>
    %43 = arith.addf %40, %42 : vector<8x128xf32>
    %44 = arith.addf %24, %43 : vector<8x128xf32>
    %c0_32 = arith.constant 0 : index
    %c0_33 = arith.constant 0 : index
    %c2 = arith.constant 2 : index
    %c0_34 = arith.constant 0 : index
    %45 = vector.load %arg2[%c0_32, %c0_33, %c2, %c0_34] : memref<2x2x8x128xf32, #tpu.memory_space<vmem>>, vector<1x1x1x128xf32>
    %46 = vector.shape_cast %45 : vector<1x1x1x128xf32> to vector<1x128xf32>
    %c1_35 = arith.constant 1 : index
    %c0_36 = arith.constant 0 : index
    %c2_37 = arith.constant 2 : index
    %c0_38 = arith.constant 0 : index
    %47 = vector.load %arg2[%c1_35, %c0_36, %c2_37, %c0_38] : memref<2x2x8x128xf32, #tpu.memory_space<vmem>>, vector<1x1x1x128xf32>
    %48 = vector.shape_cast %47 : vector<1x1x1x128xf32> to vector<1x128xf32>
    %c0_39 = arith.constant 0 : index
    %c2_40 = arith.constant 2 : index
    %c0_41 = arith.constant 0 : index
    %c0_42 = arith.constant 0 : index
    %49 = vector.load %arg3[%c0_39, %c2_40, %c0_41, %c0_42] : memref<2x8x8x128xf32, #tpu.memory_space<vmem>>, vector<1x1x8x128xf32>
    %50 = vector.shape_cast %49 : vector<1x1x8x128xf32> to vector<8x128xf32>
    %c1_43 = arith.constant 1 : index
    %c2_44 = arith.constant 2 : index
    %c0_45 = arith.constant 0 : index
    %c0_46 = arith.constant 0 : index
    %51 = vector.load %arg3[%c1_43, %c2_44, %c0_45, %c0_46] : memref<2x8x8x128xf32, #tpu.memory_space<vmem>>, vector<1x1x8x128xf32>
    %52 = vector.shape_cast %51 : vector<1x1x8x128xf32> to vector<8x128xf32>
    %53 = vector.broadcast %46 : vector<1x128xf32> to vector<8x128xf32>
    %54 = arith.mulf %53, %50 : vector<8x128xf32>
    %55 = vector.broadcast %48 : vector<1x128xf32> to vector<8x128xf32>
    %56 = arith.mulf %55, %52 : vector<8x128xf32>
    %57 = arith.subf %54, %56 : vector<8x128xf32>
    %58 = arith.addf %38, %57 : vector<8x128xf32>
    %59 = vector.broadcast %46 : vector<1x128xf32> to vector<8x128xf32>
    %60 = arith.mulf %59, %52 : vector<8x128xf32>
    %61 = vector.broadcast %48 : vector<1x128xf32> to vector<8x128xf32>
    %62 = arith.mulf %61, %50 : vector<8x128xf32>
    %63 = arith.addf %60, %62 : vector<8x128xf32>
    %64 = arith.addf %44, %63 : vector<8x128xf32>
    %c0_47 = arith.constant 0 : index
    %c0_48 = arith.constant 0 : index
    %c3 = arith.constant 3 : index
    %c0_49 = arith.constant 0 : index
    %65 = vector.load %arg2[%c0_47, %c0_48, %c3, %c0_49] : memref<2x2x8x128xf32, #tpu.memory_space<vmem>>, vector<1x1x1x128xf32>
    %66 = vector.shape_cast %65 : vector<1x1x1x128xf32> to vector<1x128xf32>
    %c1_50 = arith.constant 1 : index
    %c0_51 = arith.constant 0 : index
    %c3_52 = arith.constant 3 : index
    %c0_53 = arith.constant 0 : index
    %67 = vector.load %arg2[%c1_50, %c0_51, %c3_52, %c0_53] : memref<2x2x8x128xf32, #tpu.memory_space<vmem>>, vector<1x1x1x128xf32>
    %68 = vector.shape_cast %67 : vector<1x1x1x128xf32> to vector<1x128xf32>
    %c0_54 = arith.constant 0 : index
    %c3_55 = arith.constant 3 : index
    %c0_56 = arith.constant 0 : index
    %c0_57 = arith.constant 0 : index
    %69 = vector.load %arg3[%c0_54, %c3_55, %c0_56, %c0_57] : memref<2x8x8x128xf32, #tpu.memory_space<vmem>>, vector<1x1x8x128xf32>
    %70 = vector.shape_cast %69 : vector<1x1x8x128xf32> to vector<8x128xf32>
    %c1_58 = arith.constant 1 : index
    %c3_59 = arith.constant 3 : index
    %c0_60 = arith.constant 0 : index
    %c0_61 = arith.constant 0 : index
    %71 = vector.load %arg3[%c1_58, %c3_59, %c0_60, %c0_61] : memref<2x8x8x128xf32, #tpu.memory_space<vmem>>, vector<1x1x8x128xf32>
    %72 = vector.shape_cast %71 : vector<1x1x8x128xf32> to vector<8x128xf32>
    %73 = vector.broadcast %66 : vector<1x128xf32> to vector<8x128xf32>
    %74 = arith.mulf %73, %70 : vector<8x128xf32>
    %75 = vector.broadcast %68 : vector<1x128xf32> to vector<8x128xf32>
    %76 = arith.mulf %75, %72 : vector<8x128xf32>
    %77 = arith.subf %74, %76 : vector<8x128xf32>
    %78 = arith.addf %58, %77 : vector<8x128xf32>
    %79 = vector.broadcast %66 : vector<1x128xf32> to vector<8x128xf32>
    %80 = arith.mulf %79, %72 : vector<8x128xf32>
    %81 = vector.broadcast %68 : vector<1x128xf32> to vector<8x128xf32>
    %82 = arith.mulf %81, %70 : vector<8x128xf32>
    %83 = arith.addf %80, %82 : vector<8x128xf32>
    %84 = arith.addf %64, %83 : vector<8x128xf32>
    %c0_62 = arith.constant 0 : index
    %c0_63 = arith.constant 0 : index
    %c0_64 = arith.constant 0 : index
    %c0_65 = arith.constant 0 : index
    %85 = vector.load %arg4[%c0_62, %c0_63, %c0_64, %c0_65] : memref<2x2x8x128xf32, #tpu.memory_space<vmem>>, vector<1x1x8x128xf32>
    %86 = vector.shape_cast %85 : vector<1x1x8x128xf32> to vector<8x128xf32>
    %87 = arith.addf %86, %78 : vector<8x128xf32>
    %c0_66 = arith.constant 0 : index
    %c0_67 = arith.constant 0 : index
    %c0_68 = arith.constant 0 : index
    %c0_69 = arith.constant 0 : index
    %88 = vector.load %arg4[%c0_66, %c0_67, %c0_68, %c0_69] : memref<2x2x8x128xf32, #tpu.memory_space<vmem>>, vector<1x1x8x128xf32>
    %89 = vector.shape_cast %88 : vector<1x1x8x128xf32> to vector<8x128xf32>
    %90 = vector.shape_cast %87 : vector<8x128xf32> to vector<1x1x8x128xf32>
    tpu.vector_store %arg4[%c0_66, %c0_67, %c0_68, %c0_69], %90 {strides = array<i32>} : memref<2x2x8x128xf32, #tpu.memory_space<vmem>>, vector<1x1x8x128xf32>,
    %c1_70 = arith.constant 1 : index
    %c0_71 = arith.constant 0 : index
    %c0_72 = arith.constant 0 : index
    %c0_73 = arith.constant 0 : index
    %91 = vector.load %arg4[%c1_70, %c0_71, %c0_72, %c0_73] : memref<2x2x8x128xf32, #tpu.memory_space<vmem>>, vector<1x1x8x128xf32>
    %92 = vector.shape_cast %91 : vector<1x1x8x128xf32> to vector<8x128xf32>
    %93 = arith.addf %92, %84 : vector<8x128xf32>
    %c1_74 = arith.constant 1 : index
    %c0_75 = arith.constant 0 : index
    %c0_76 = arith.constant 0 : index
    %c0_77 = arith.constant 0 : index
    %94 = vector.load %arg4[%c1_74, %c0_75, %c0_76, %c0_77] : memref<2x2x8x128xf32, #tpu.memory_space<vmem>>, vector<1x1x8x128xf32>
    %95 = vector.shape_cast %94 : vector<1x1x8x128xf32> to vector<8x128xf32>
    %96 = vector.shape_cast %93 : vector<8x128xf32> to vector<1x1x8x128xf32>
    tpu.vector_store %arg4[%c1_74, %c0_75, %c0_76, %c0_77], %96 {strides = array<i32>} : memref<2x2x8x128xf32, #tpu.memory_space<vmem>>, vector<1x1x8x128xf32>,
    %cst_78 = arith.constant 0.000000e+00 : f32
    %97 = vector.broadcast %cst_78 : f32 to vector<8x128xf32>
    %cst_79 = arith.constant 0.000000e+00 : f32
    %98 = vector.broadcast %cst_79 : f32 to vector<8x128xf32>
    %c0_80 = arith.constant 0 : index
    %c1_81 = arith.constant 1 : index
    %c0_82 = arith.constant 0 : index
    %c0_83 = arith.constant 0 : index
    %99 = vector.load %arg2[%c0_80, %c1_81, %c0_82, %c0_83] : memref<2x2x8x128xf32, #tpu.memory_space<vmem>>, vector<1x1x1x128xf32>
    %100 = vector.shape_cast %99 : vector<1x1x1x128xf32> to vector<1x128xf32>
    %c1_84 = arith.constant 1 : index
    %c1_85 = arith.constant 1 : index
    %c0_86 = arith.constant 0 : index
    %c0_87 = arith.constant 0 : index
    %101 = vector.load %arg2[%c1_84, %c1_85, %c0_86, %c0_87] : memref<2x2x8x128xf32, #tpu.memory_space<vmem>>, vector<1x1x1x128xf32>
    %102 = vector.shape_cast %101 : vector<1x1x1x128xf32> to vector<1x128xf32>
    %c0_88 = arith.constant 0 : index
    %c0_89 = arith.constant 0 : index
    %c0_90 = arith.constant 0 : index
    %c0_91 = arith.constant 0 : index
    %103 = vector.load %arg3[%c0_88, %c0_89, %c0_90, %c0_91] : memref<2x8x8x128xf32, #tpu.memory_space<vmem>>, vector<1x1x8x128xf32>
    %104 = vector.shape_cast %103 : vector<1x1x8x128xf32> to vector<8x128xf32>
    %c1_92 = arith.constant 1 : index
    %c0_93 = arith.constant 0 : index
    %c0_94 = arith.constant 0 : index
    %c0_95 = arith.constant 0 : index
    %105 = vector.load %arg3[%c1_92, %c0_93, %c0_94, %c0_95] : memref<2x8x8x128xf32, #tpu.memory_space<vmem>>, vector<1x1x8x128xf32>
    %106 = vector.shape_cast %105 : vector<1x1x8x128xf32> to vector<8x128xf32>
    %107 = vector.broadcast %100 : vector<1x128xf32> to vector<8x128xf32>
    %108 = arith.mulf %107, %104 : vector<8x128xf32>
    %109 = vector.broadcast %102 : vector<1x128xf32> to vector<8x128xf32>
    %110 = arith.mulf %109, %106 : vector<8x128xf32>
    %111 = arith.subf %108, %110 : vector<8x128xf32>
    %112 = arith.addf %97, %111 : vector<8x128xf32>
    %113 = vector.broadcast %100 : vector<1x128xf32> to vector<8x128xf32>
    %114 = arith.mulf %113, %106 : vector<8x128xf32>
    %115 = vector.broadcast %102 : vector<1x128xf32> to vector<8x128xf32>
    %116 = arith.mulf %115, %104 : vector<8x128xf32>
    %117 = arith.addf %114, %116 : vector<8x128xf32>
    %118 = arith.addf %98, %117 : vector<8x128xf32>
    %c0_96 = arith.constant 0 : index
    %c1_97 = arith.constant 1 : index
    %c1_98 = arith.constant 1 : index
    %c0_99 = arith.constant 0 : index
    %119 = vector.load %arg2[%c0_96, %c1_97, %c1_98, %c0_99] : memref<2x2x8x128xf32, #tpu.memory_space<vmem>>, vector<1x1x1x128xf32>
    %120 = vector.shape_cast %119 : vector<1x1x1x128xf32> to vector<1x128xf32>
    %c1_100 = arith.constant 1 : index
    %c1_101 = arith.constant 1 : index
    %c1_102 = arith.constant 1 : index
    %c0_103 = arith.constant 0 : index
    %121 = vector.load %arg2[%c1_100, %c1_101, %c1_102, %c0_103] : memref<2x2x8x128xf32, #tpu.memory_space<vmem>>, vector<1x1x1x128xf32>
    %122 = vector.shape_cast %121 : vector<1x1x1x128xf32> to vector<1x128xf32>
    %c0_104 = arith.constant 0 : index
    %c1_105 = arith.constant 1 : index
    %c0_106 = arith.constant 0 : index
    %c0_107 = arith.constant 0 : index
    %123 = vector.load %arg3[%c0_104, %c1_105, %c0_106, %c0_107] : memref<2x8x8x128xf32, #tpu.memory_space<vmem>>, vector<1x1x8x128xf32>
    %124 = vector.shape_cast %123 : vector<1x1x8x128xf32> to vector<8x128xf32>
    %c1_108 = arith.constant 1 : index
    %c1_109 = arith.constant 1 : index
    %c0_110 = arith.constant 0 : index
    %c0_111 = arith.constant 0 : index
    %125 = vector.load %arg3[%c1_108, %c1_109, %c0_110, %c0_111] : memref<2x8x8x128xf32, #tpu.memory_space<vmem>>, vector<1x1x8x128xf32>
    %126 = vector.shape_cast %125 : vector<1x1x8x128xf32> to vector<8x128xf32>
    %127 = vector.broadcast %120 : vector<1x128xf32> to vector<8x128xf32>
    %128 = arith.mulf %127, %124 : vector<8x128xf32>
    %129 = vector.broadcast %122 : vector<1x128xf32> to vector<8x128xf32>
    %130 = arith.mulf %129, %126 : vector<8x128xf32>
    %131 = arith.subf %128, %130 : vector<8x128xf32>
    %132 = arith.addf %112, %131 : vector<8x128xf32>
    %133 = vector.broadcast %120 : vector<1x128xf32> to vector<8x128xf32>
    %134 = arith.mulf %133, %126 : vector<8x128xf32>
    %135 = vector.broadcast %122 : vector<1x128xf32> to vector<8x128xf32>
    %136 = arith.mulf %135, %124 : vector<8x128xf32>
    %137 = arith.addf %134, %136 : vector<8x128xf32>
    %138 = arith.addf %118, %137 : vector<8x128xf32>
    %c0_112 = arith.constant 0 : index
    %c1_113 = arith.constant 1 : index
    %c2_114 = arith.constant 2 : index
    %c0_115 = arith.constant 0 : index
    %139 = vector.load %arg2[%c0_112, %c1_113, %c2_114, %c0_115] : memref<2x2x8x128xf32, #tpu.memory_space<vmem>>, vector<1x1x1x128xf32>
    %140 = vector.shape_cast %139 : vector<1x1x1x128xf32> to vector<1x128xf32>
    %c1_116 = arith.constant 1 : index
    %c1_117 = arith.constant 1 : index
    %c2_118 = arith.constant 2 : index
    %c0_119 = arith.constant 0 : index
    %141 = vector.load %arg2[%c1_116, %c1_117, %c2_118, %c0_119] : memref<2x2x8x128xf32, #tpu.memory_space<vmem>>, vector<1x1x1x128xf32>
    %142 = vector.shape_cast %141 : vector<1x1x1x128xf32> to vector<1x128xf32>
    %c0_120 = arith.constant 0 : index
    %c2_121 = arith.constant 2 : index
    %c0_122 = arith.constant 0 : index
    %c0_123 = arith.constant 0 : index
    %143 = vector.load %arg3[%c0_120, %c2_121, %c0_122, %c0_123] : memref<2x8x8x128xf32, #tpu.memory_space<vmem>>, vector<1x1x8x128xf32>
    %144 = vector.shape_cast %143 : vector<1x1x8x128xf32> to vector<8x128xf32>
    %c1_124 = arith.constant 1 : index
    %c2_125 = arith.constant 2 : index
    %c0_126 = arith.constant 0 : index
    %c0_127 = arith.constant 0 : index
    %145 = vector.load %arg3[%c1_124, %c2_125, %c0_126, %c0_127] : memref<2x8x8x128xf32, #tpu.memory_space<vmem>>, vector<1x1x8x128xf32>
    %146 = vector.shape_cast %145 : vector<1x1x8x128xf32> to vector<8x128xf32>
    %147 = vector.broadcast %140 : vector<1x128xf32> to vector<8x128xf32>
    %148 = arith.mulf %147, %144 : vector<8x128xf32>
    %149 = vector.broadcast %142 : vector<1x128xf32> to vector<8x128xf32>
    %150 = arith.mulf %149, %146 : vector<8x128xf32>
    %151 = arith.subf %148, %150 : vector<8x128xf32>
    %152 = arith.addf %132, %151 : vector<8x128xf32>
    %153 = vector.broadcast %140 : vector<1x128xf32> to vector<8x128xf32>
    %154 = arith.mulf %153, %146 : vector<8x128xf32>
    %155 = vector.broadcast %142 : vector<1x128xf32> to vector<8x128xf32>
    %156 = arith.mulf %155, %144 : vector<8x128xf32>
    %157 = arith.addf %154, %156 : vector<8x128xf32>
    %158 = arith.addf %138, %157 : vector<8x128xf32>
    %c0_128 = arith.constant 0 : index
    %c1_129 = arith.constant 1 : index
    %c3_130 = arith.constant 3 : index
    %c0_131 = arith.constant 0 : index
    %159 = vector.load %arg2[%c0_128, %c1_129, %c3_130, %c0_131] : memref<2x2x8x128xf32, #tpu.memory_space<vmem>>, vector<1x1x1x128xf32>
    %160 = vector.shape_cast %159 : vector<1x1x1x128xf32> to vector<1x128xf32>
    %c1_132 = arith.constant 1 : index
    %c1_133 = arith.constant 1 : index
    %c3_134 = arith.constant 3 : index
    %c0_135 = arith.constant 0 : index
    %161 = vector.load %arg2[%c1_132, %c1_133, %c3_134, %c0_135] : memref<2x2x8x128xf32, #tpu.memory_space<vmem>>, vector<1x1x1x128xf32>
    %162 = vector.shape_cast %161 : vector<1x1x1x128xf32> to vector<1x128xf32>
    %c0_136 = arith.constant 0 : index
    %c3_137 = arith.constant 3 : index
    %c0_138 = arith.constant 0 : index
    %c0_139 = arith.constant 0 : index
    %163 = vector.load %arg3[%c0_136, %c3_137, %c0_138, %c0_139] : memref<2x8x8x128xf32, #tpu.memory_space<vmem>>, vector<1x1x8x128xf32>
    %164 = vector.shape_cast %163 : vector<1x1x8x128xf32> to vector<8x128xf32>
    %c1_140 = arith.constant 1 : index
    %c3_141 = arith.constant 3 : index
    %c0_142 = arith.constant 0 : index
    %c0_143 = arith.constant 0 : index
    %165 = vector.load %arg3[%c1_140, %c3_141, %c0_142, %c0_143] : memref<2x8x8x128xf32, #tpu.memory_space<vmem>>, vector<1x1x8x128xf32>
    %166 = vector.shape_cast %165 : vector<1x1x8x128xf32> to vector<8x128xf32>
    %167 = vector.broadcast %160 : vector<1x128xf32> to vector<8x128xf32>
    %168 = arith.mulf %167, %164 : vector<8x128xf32>
    %169 = vector.broadcast %162 : vector<1x128xf32> to vector<8x128xf32>
    %170 = arith.mulf %169, %166 : vector<8x128xf32>
    %171 = arith.subf %168, %170 : vector<8x128xf32>
    %172 = arith.addf %152, %171 : vector<8x128xf32>
    %173 = vector.broadcast %160 : vector<1x128xf32> to vector<8x128xf32>
    %174 = arith.mulf %173, %166 : vector<8x128xf32>
    %175 = vector.broadcast %162 : vector<1x128xf32> to vector<8x128xf32>
    %176 = arith.mulf %175, %164 : vector<8x128xf32>
    %177 = arith.addf %174, %176 : vector<8x128xf32>
    %178 = arith.addf %158, %177 : vector<8x128xf32>
    %c0_144 = arith.constant 0 : index
    %c1_145 = arith.constant 1 : index
    %c0_146 = arith.constant 0 : index
    %c0_147 = arith.constant 0 : index
    %179 = vector.load %arg4[%c0_144, %c1_145, %c0_146, %c0_147] : memref<2x2x8x128xf32, #tpu.memory_space<vmem>>, vector<1x1x8x128xf32>
    %180 = vector.shape_cast %179 : vector<1x1x8x128xf32> to vector<8x128xf32>
    %181 = arith.addf %180, %172 : vector<8x128xf32>
    %c0_148 = arith.constant 0 : index
    %c1_149 = arith.constant 1 : index
    %c0_150 = arith.constant 0 : index
    %c0_151 = arith.constant 0 : index
    %182 = vector.load %arg4[%c0_148, %c1_149, %c0_150, %c0_151] : memref<2x2x8x128xf32, #tpu.memory_space<vmem>>, vector<1x1x8x128xf32>
    %183 = vector.shape_cast %182 : vector<1x1x8x128xf32> to vector<8x128xf32>
    %184 = vector.shape_cast %181 : vector<8x128xf32> to vector<1x1x8x128xf32>
    tpu.vector_store %arg4[%c0_148, %c1_149, %c0_150, %c0_151], %184 {strides = array<i32>} : memref<2x2x8x128xf32, #tpu.memory_space<vmem>>, vector<1x1x8x128xf32>,
    %c1_152 = arith.constant 1 : index
    %c1_153 = arith.constant 1 : index
    %c0_154 = arith.constant 0 : index
    %c0_155 = arith.constant 0 : index
    %185 = vector.load %arg4[%c1_152, %c1_153, %c0_154, %c0_155] : memref<2x2x8x128xf32, #tpu.memory_space<vmem>>, vector<1x1x8x128xf32>
    %186 = vector.shape_cast %185 : vector<1x1x8x128xf32> to vector<8x128xf32>
    %187 = arith.addf %186, %178 : vector<8x128xf32>
    %c1_156 = arith.constant 1 : index
    %c1_157 = arith.constant 1 : index
    %c0_158 = arith.constant 0 : index
    %c0_159 = arith.constant 0 : index
    %188 = vector.load %arg4[%c1_156, %c1_157, %c0_158, %c0_159] : memref<2x2x8x128xf32, #tpu.memory_space<vmem>>, vector<1x1x8x128xf32>
    %189 = vector.shape_cast %188 : vector<1x1x8x128xf32> to vector<8x128xf32>
    %190 = vector.shape_cast %187 : vector<8x128xf32> to vector<1x1x8x128xf32>
    tpu.vector_store %arg4[%c1_156, %c1_157, %c0_158, %c0_159], %190 {strides = array<i32>} : memref<2x2x8x128xf32, #tpu.memory_space<vmem>>, vector<1x1x8x128xf32>,
    return
  }
  func.func @transform_0(%arg0: i32, %arg1: i32) -> (i32, i32, i32, i32) {
    %c0_i32 = arith.constant 0 : i32
    %c0_i32_0 = arith.constant 0 : i32
    %c0_i32_1 = arith.constant 0 : i32
    return %c0_i32, %c0_i32_0, %arg1, %arg0 : i32, i32, i32, i32
  }
  func.func @transform_1(%arg0: i32, %arg1: i32) -> (i32, i32, i32, i32) {
    %c0_i32 = arith.constant 0 : i32
    %c0_i32_0 = arith.constant 0 : i32
    %c0_i32_1 = arith.constant 0 : i32
    return %c0_i32, %arg1, %c0_i32_0, %arg0 : i32, i32, i32, i32
  }
  func.func @transform_2(%arg0: i32, %arg1: i32) -> (i32, i32, i32, i32) {
    %c0_i32 = arith.constant 0 : i32
    %c0_i32_0 = arith.constant 0 : i32
    %c0_i32_1 = arith.constant 0 : i32
    %c0_i32_2 = arith.constant 0 : i32
    return %c0_i32, %c0_i32_0, %c0_i32_1, %arg0 : i32, i32, i32, i32
  }
}

</mosaic_0001>

<llo_original>
// kernel: tpu_custom_call.1
$region0: #{tpu_custom_call.1}
  #allocation0 [shape = 'u32[]', space=smem, size = 0x4, offset = 0x4, fixed_abs, tag = 'smem constant byte address 0x4 - core index']
  #allocation1 [shape = 'u32[144,128]{1,0:T(1,128)}', space=vmem, size = 0x12000, scoped, tag = 'internal scratch']
  %s0 = inlined_call_operand.hbm [shape: f32[2,2,8,256], index: 0, kind: input, shape index: {}]
  %s1 = inlined_call_operand.hbm [shape: f32[2,8,8,256], index: 1, kind: input, shape index: {}]
  %s2 = inlined_call_operand.hbm [shape: f32[2,2,8,256], index: 2, kind: output, shape index: {}]
  %s3 = sld [smem:[#allocation0]]
  $region53: #{tpu_custom_call.1} parent=0
    _
  %s5 = ssub.s32 1, %s3
  %s6 = scalar_select 0, %s5, %s3
  $region1: #{tpu_custom_call.1} parent=0
    #allocation2 [shape = 'u8[32768]{0}', space=vmem, size = 0x8000, scoped, tag = 'input window, operand 0']
    #allocation3 [shape = 's32[2]{0}', space=sflag, size = 0x8, scoped, tag = 'scoped memory for tpu_custom_call.1']
    #allocation4 [shape = 's32[2]{0}', space=sflag, size = 0x8, scoped, tag = 'scoped memory for tpu_custom_call.1']
    #allocation5 [shape = 'u8[131072]{0}', space=vmem, size = 0x20000, scoped, tag = 'input window, operand 1']
    #allocation6 [shape = 's32[2]{0}', space=sflag, size = 0x8, scoped, tag = 'scoped memory for tpu_custom_call.1']
    #allocation7 [shape = 'u8[32768]{0}', space=vmem, size = 0x8000, scoped, tag = 'output window, operand 0']
    %7 = vsyncpa [#allocation3], 0
    %s8 = scalar_lea.sflag [#allocation3], 1
    %9 = vsyncpa %s8, 0
    %10 = vsyncpa [#allocation6], 0
    %s11 = scalar_lea.sflag [#allocation6], 1
    %12 = vsyncpa %s11, 0
    %13 = vsyncpa [#allocation4], 0
    %s14 = scalar_lea.sflag [#allocation4], 1
    %15 = vsyncpa %s14, 0
    loop: start=0, step=1, limit=4
    $region2: #{tpu_custom_call.1} parent=1 // loop_pre_header
      _
    $region3: #{tpu_custom_call.1} parent=1 // loop_header
      %s17 = sphi 0, %s21
      %p18 = scmp.ge.s32.totalorder %s17, 4
      %s24 = sphi 0, %s36
      %s25 = sphi 0, %s32
      %s26 = sphi 0, %s24
      %s27 = sphi 0, %s25
      %s28 = sphi 0, %s26
      %s29 = sphi 0, %s27
      %s41 = sphi 0, %s43
      %s44 = sphi 0, %s41
      %s45 = sphi 0, %s44
      %s61 = sphi 0, %s45
      %s69 = sphi 0, %s71
      %s72 = sphi 0, %s69
      %s73 = sphi 0, %s72
      %s89 = sphi 0, %s73
      %s95 = sphi 0, %s97
      %s98 = sphi 0, %s95
      %s99 = sphi 0, %s98
      %s115 = sphi 0, %s99
    $region4: #{tpu_custom_call.1} parent=1 // loop_header_branch
      %20 = sbr.rel (%p18) target = $region8
    $region5: #{tpu_custom_call.1} parent=1 // loop_body
      %s22 = ssub.s32 %s17, 1
      %s23 = ssub.s32 %s17, 2
      %s30 = sadd.s32 1, %s25
      %p31 = scmp.ge.s32.totalorder %s30, 1
      %s32 = scalar_select %p31, 0, %s30
      %s33 = sadd.s32 1, %s24
      %s34 = scalar_select %p31, %s33, %s24
      %p35 = scmp.ge.s32.totalorder %s34, 2
      %s36 = scalar_select %p35, 0, %s34
      %s37 = ssub.s32 %s25, %s32
      %s38 = ssub.s32 %s24, %s36
      %s39 = sor.u32 %s37, %s38
      %p40 = scmp.eq.s32.totalorder %s39, 0
      %s42 = sadd.s32 %s41, 1
      %s43 = scalar_select %p40, %s41, %s42
      %p46 = pneg %p40
      %p47 = scmp.eq.s32.totalorder %s17, 1
      %p48 = por %p46, %p47
      %p49 = scmp.ne.s32.totalorder %s41, %s44
      %p50 = scmp.eq.s32.totalorder %s17, 0
      %p51 = por %p49, %p50
      %p52 = scmp.ne.s32.totalorder %s41, %s44
      %p53 = scmp.eq.s32.totalorder %s22, 1
      %p54 = por %p52, %p53
      %p55 = scmp.ne.s32.totalorder %s44, %s45
      %p56 = scmp.eq.s32.totalorder %s22, 0
      %p57 = por %p55, %p56
      %p58 = scmp.ne.s32.totalorder %s44, %s45
      %p59 = scmp.eq.s32.totalorder %s23, 1
      %p60 = por %p58, %p59
      %p62 = scmp.ne.s32.totalorder %s45, %s61
      %p63 = scmp.eq.s32.totalorder %s23, 0
      %p64 = por %p62, %p63
      %s65 = ssub.s32 %s25, %s32
      %s66 = ssub.s32 %s24, %s36
      %s67 = sor.u32 %s65, %s66
      %p68 = scmp.eq.s32.totalorder %s67, 0
      %s70 = sadd.s32 %s69, 1
      %s71 = scalar_select %p68, %s69, %s70
      %p74 = pneg %p68
      %p75 = scmp.eq.s32.totalorder %s17, 1
      %p76 = por %p74, %p75
      %p77 = scmp.ne.s32.totalorder %s69, %s72
      %p78 = scmp.eq.s32.totalorder %s17, 0
      %p79 = por %p77, %p78
      %p80 = scmp.ne.s32.totalorder %s69, %s72
      %p81 = scmp.eq.s32.totalorder %s22, 1
      %p82 = por %p80, %p81
      %p83 = scmp.ne.s32.totalorder %s72, %s73
      %p84 = scmp.eq.s32.totalorder %s22, 0
      %p85 = por %p83, %p84
      %p86 = scmp.ne.s32.totalorder %s72, %s73
      %p87 = scmp.eq.s32.totalorder %s23, 1
      %p88 = por %p86, %p87
      %p90 = scmp.ne.s32.totalorder %s73, %s89
      %p91 = scmp.eq.s32.totalorder %s23, 0
      %p92 = por %p90, %p91
      %s93 = ssub.s32 %s24, %s36
      %p94 = scmp.eq.s32.totalorder %s93, 0
      %s96 = sadd.s32 %s95, 1
      %s97 = scalar_select %p94, %s95, %s96
      %p100 = pneg %p94
      %p101 = scmp.eq.s32.totalorder %s17, 1
      %p102 = por %p100, %p101
      %p103 = scmp.ne.s32.totalorder %s95, %s98
      %p104 = scmp.eq.s32.totalorder %s17, 0
      %p105 = por %p103, %p104
      %p106 = scmp.ne.s32.totalorder %s95, %s98
      %p107 = scmp.eq.s32.totalorder %s22, 1
      %p108 = por %p106, %p107
      %p109 = scmp.ne.s32.totalorder %s98, %s99
      %p110 = scmp.eq.s32.totalorder %s22, 0
      %p111 = por %p109, %p110
      %p112 = scmp.ne.s32.totalorder %s98, %s99
      %p113 = scmp.eq.s32.totalorder %s23, 1
      %p114 = por %p112, %p113
      %p116 = scmp.ne.s32.totalorder %s99, %s115
      %p117 = scmp.eq.s32.totalorder %s23, 0
      %p118 = por %p116, %p117
      %p119 = scmp.le.s32.totalorder 1, %s17
      %p120 = scmp.lt.s32.totalorder %s17, 3
      %p121 = pnand %p119, %p120
      %p122 = pneg %p121
      // Predicated region
      $region9: #{tpu_custom_call.1} parent=5 // pred_check
        _
      $region10: #{tpu_custom_call.1} parent=5 // pred_check_branch
        %124 = sbr.rel (%p121) target = $region12
      $region11: #{tpu_custom_call.1} parent=5 // pred_region
        %s125 = ssub.s32 %s17, 1
      $region12: #{tpu_custom_call.1} parent=5 // pred_fallthru
        _
      %p126 = scmp.lt.s32.totalorder %s17, 2
      // Predicated region
      $region13: #{tpu_custom_call.1} parent=5 // pred_check
        %p127 = pneg %p126
      $region14: #{tpu_custom_call.1} parent=5 // pred_check_branch
        %129 = sbr.rel (%p127) target = $region16
      $region15: #{tpu_custom_call.1} parent=5 // pred_region
        // Predicated region
        $region17: #{tpu_custom_call.1} parent=15 // pred_check
          %p130 = pneg %p51
        $region18: #{tpu_custom_call.1} parent=15 // pred_check_branch
          %132 = sbr.rel (%p130) target = $region20
        $region19: #{tpu_custom_call.1} parent=15 // pred_region
          %s133 = sand.u32 %s41, 1
          %s134 = scalar_lea.sflag [#allocation3], %s133
          %s135 = sand.u32 %s41, 1
          %s136 = smul.addr %s135, 32
          %s137 = scalar_lea.vmem [#allocation2], %s136
          %s139 = ssub.s32 512, 512
          %140 = vsyncadd %s134, %s139
          %s141 = smul.addr %s25, 2
          %s142 = sadd.s32 %s24, %s141
          %s143 = smul.addr %s142, 128
          %s144 = scalar_lea.hbm %s0, %s143
          %s145 = sshll.u32 %s137, 4
          %s146 = int_to_ptr.vmem [resolvable:$true] %s145
          %151 = dma.hbm_to_vmem [thread:$0]  %s144, 512, %s146, %s134, 256, 128, 8
        $region20: #{tpu_custom_call.1} parent=15 // pred_fallthru
          _
        // Predicated region
        $region21: #{tpu_custom_call.1} parent=15 // pred_check
          %p152 = pneg %p79
        $region22: #{tpu_custom_call.1} parent=15 // pred_check_branch
          %154 = sbr.rel (%p152) target = $region24
        $region23: #{tpu_custom_call.1} parent=15 // pred_region
          %s155 = sand.u32 %s69, 1
          %s156 = scalar_lea.sflag [#allocation6], %s155
          %s157 = sand.u32 %s69, 1
          %s158 = smul.addr %s157, 128
          %s159 = scalar_lea.vmem [#allocation5], %s158
          %s160 = smul.u32 8, %s25
          %s162 = ssub.s32 2048, 2048
          %163 = vsyncadd %s156, %s162
          %s164 = smul.addr %s160, 2
          %s165 = sadd.s32 %s24, %s164
          %s166 = smul.addr %s165, 128
          %s167 = scalar_lea.hbm %s1, %s166
          %s168 = sshll.u32 %s159, 4
          %s169 = int_to_ptr.vmem [resolvable:$true] %s168
          %174 = dma.hbm_to_vmem [thread:$0]  %s167, 2048, %s169, %s156, 256, 128, 8
        $region24: #{tpu_custom_call.1} parent=15 // pred_fallthru
          _
      $region16: #{tpu_custom_call.1} parent=5 // pred_fallthru
        _
      %p175 = scmp.le.s32.totalorder 1, %s17
      %p176 = scmp.lt.s32.totalorder %s17, 3
      %p177 = pnand %p175, %p176
      %p178 = pneg %p177
      // Predicated region
      $region25: #{tpu_custom_call.1} parent=5 // pred_check
        _
      $region26: #{tpu_custom_call.1} parent=5 // pred_check_branch
        %180 = sbr.rel (%p177) target = $region28
      $region27: #{tpu_custom_call.1} parent=5 // pred_region
        %s181 = ssub.s32 %s17, 1
        %s182 = sand.u32 %s44, 1
        %s183 = scalar_lea.sflag [#allocation3], %s182
        %s184 = sand.u32 %s44, 1
        %s185 = smul.addr %s184, 32
        %s186 = scalar_lea.vmem [#allocation2], %s185
        // Predicated region
        $region29: #{tpu_custom_call.1} parent=27 // pred_check
          %p187 = pneg %p57
        $region30: #{tpu_custom_call.1} parent=27 // pred_check_branch
          %189 = sbr.rel (%p187) target = $region32
        $region31: #{tpu_custom_call.1} parent=27 // pred_region
          %190 = dma.done %s183, 512
        $region32: #{tpu_custom_call.1} parent=27 // pred_fallthru
          _
        %s191 = sand.u32 %s72, 1
        %s192 = scalar_lea.sflag [#allocation6], %s191
        %s193 = sand.u32 %s72, 1
        %s194 = smul.addr %s193, 128
        %s195 = scalar_lea.vmem [#allocation5], %s194
        // Predicated region
        $region33: #{tpu_custom_call.1} parent=27 // pred_check
          %p196 = pneg %p85
        $region34: #{tpu_custom_call.1} parent=27 // pred_check_branch
          %198 = sbr.rel (%p196) target = $region36
        $region35: #{tpu_custom_call.1} parent=27 // pred_region
          %199 = dma.done %s192, 2048
        $region36: #{tpu_custom_call.1} parent=27 // pred_fallthru
          _
        %s200 = sand.u32 %s44, 1
        %s201 = scalar_lea.sflag [#allocation3], %s200
        %s202 = sand.u32 %s44, 1
        %s203 = smul.addr %s202, 32
        %s204 = scalar_lea.vmem [#allocation2], %s203
        %p205 = pneg %p57
        %p206 = pneg %p54
        %s207 = sand.u32 %s72, 1
        %s208 = scalar_lea.sflag [#allocation6], %s207
        %s209 = sand.u32 %s72, 1
        %s210 = smul.addr %s209, 128
        %s211 = scalar_lea.vmem [#allocation5], %s210
        %p212 = pneg %p85
        %p213 = pneg %p82
        %p214 = pneg %p111
        %p215 = pneg %p108
        %s216 = sand.u32 %s98, 1
        %s217 = scalar_lea.sflag [#allocation4], %s216
        %s218 = sand.u32 %s98, 1
        %s219 = smul.addr %s218, 32
        %s220 = scalar_lea.vmem [#allocation7], %s219
        %s221 = smul.u32 8, %s27
        %p222 = scmp.eq.s32.totalorder %s27, 0
        // Predicated region
        $region37: #{tpu_custom_call.1} parent=27 // pred_check
          %p223 = pneg %p222
        $region38: #{tpu_custom_call.1} parent=27 // pred_check_branch
          %225 = sbr.rel (%p223) target = $region40
        $region39: #{tpu_custom_call.1} parent=27 // pred_region
          %226 = vst [vmem:[%s220] sm:$0xff] 0.0
          %227 = vst [vmem:[%s220 + $0x8] sm:$0xff] 0.0
          %228 = vst [vmem:[%s220 + $0x10] sm:$0xff] 0.0
          %229 = vst [vmem:[%s220 + $0x18] sm:$0xff] 0.0
        $region40: #{tpu_custom_call.1} parent=27 // pred_fallthru
          _
        %v230 = vld [vmem:[%s186] sm:$0x1]
        %s231 = scalar_lea.vmem %s186, 16 [#allocation2]
        %v232 = vld [vmem:[%s231] sm:$0x1]
        %v233 = vld [vmem:[%s195] sm:$0xff]
        %s234 = scalar_lea.vmem %s195, 64 [#allocation5]
        %v235 = vld [vmem:[%s234] sm:$0xff]
        %v236 = vlaneseq
        %v237 = vshrl.u32 %v236, 7
        %v238 = vsub.s32 0, %v237
        %v239 = vrot.slane %v230, %v238
        %v240 = vmul.f32 %v239, %v233
        %v241 = vlaneseq
        %v242 = vshrl.u32 %v241, 7
        %v243 = vsub.s32 0, %v242
        %v244 = vrot.slane %v232, %v243
        %v245 = vmul.f32 %v244, %v235
        %v246 = vsub.f32 %v240, %v245
        %v247 = vadd.f32 %v246, 0.0
        %v248 = vmul.f32 %v239, %v235
        %v249 = vmul.f32 %v244, %v233
        %v250 = vadd.f32 %v248, %v249
        %v251 = vadd.f32 %v250, 0.0
        %v252 = vld [vmem:[%s186 + $0x1] sm:$0x1]
        %v253 = vld [vmem:[%s231 + $0x1] sm:$0x1]
        %s254 = scalar_lea.vmem %s195, 8 [#allocation5]
        %v255 = vld [vmem:[%s254] sm:$0xff]
        %s256 = scalar_lea.vmem %s195, 72 [#allocation5]
        %v257 = vld [vmem:[%s256] sm:$0xff]
        %v258 = vlaneseq
        %v259 = vshrl.u32 %v258, 7
        %v260 = vsub.s32 0, %v259
        %v261 = vrot.slane %v252, %v260
        %v262 = vmul.f32 %v261, %v255
        %v263 = vlaneseq
        %v264 = vshrl.u32 %v263, 7
        %v265 = vsub.s32 0, %v264
        %v266 = vrot.slane %v253, %v265
        %v267 = vmul.f32 %v266, %v257
        %v268 = vsub.f32 %v262, %v267
        %v269 = vadd.f32 %v247, %v268
        %v270 = vmul.f32 %v261, %v257
        %v271 = vmul.f32 %v266, %v255
        %v272 = vadd.f32 %v270, %v271
        %v273 = vadd.f32 %v251, %v272
        %v274 = vld [vmem:[%s186 + $0x2] sm:$0x1]
        %v275 = vld [vmem:[%s231 + $0x2] sm:$0x1]
        %s276 = scalar_lea.vmem %s195, 16 [#allocation5]
        %v277 = vld [vmem:[%s276] sm:$0xff]
        %s278 = scalar_lea.vmem %s195, 80 [#allocation5]
        %v279 = vld [vmem:[%s278] sm:$0xff]
        %v280 = vlaneseq
        %v281 = vshrl.u32 %v280, 7
        %v282 = vsub.s32 0, %v281
        %v283 = vrot.slane %v274, %v282
        %v284 = vmul.f32 %v283, %v277
        %v285 = vlaneseq
        %v286 = vshrl.u32 %v285, 7
        %v287 = vsub.s32 0, %v286
        %v288 = vrot.slane %v275, %v287
        %v289 = vmul.f32 %v288, %v279
        %v290 = vsub.f32 %v284, %v289
        %v291 = vadd.f32 %v269, %v290
        %v292 = vmul.f32 %v283, %v279
        %v293 = vmul.f32 %v288, %v277
        %v294 = vadd.f32 %v292, %v293
        %v295 = vadd.f32 %v273, %v294
        %v296 = vld [vmem:[%s186 + $0x3] sm:$0x1]
        %v297 = vld [vmem:[%s231 + $0x3] sm:$0x1]
        %s298 = scalar_lea.vmem %s195, 24 [#allocation5]
        %v299 = vld [vmem:[%s298] sm:$0xff]
        %s300 = scalar_lea.vmem %s195, 88 [#allocation5]
        %v301 = vld [vmem:[%s300] sm:$0xff]
        %v302 = vlaneseq
        %v303 = vshrl.u32 %v302, 7
        %v304 = vsub.s32 0, %v303
        %v305 = vrot.slane %v296, %v304
        %v306 = vmul.f32 %v305, %v299
        %v307 = vlaneseq
        %v308 = vshrl.u32 %v307, 7
        %v309 = vsub.s32 0, %v308
        %v310 = vrot.slane %v297, %v309
        %v311 = vmul.f32 %v310, %v301
        %v312 = vsub.f32 %v306, %v311
        %v313 = vadd.f32 %v291, %v312
        %v314 = vmul.f32 %v305, %v301
        %v315 = vmul.f32 %v310, %v299
        %v316 = vadd.f32 %v314, %v315
        %v317 = vadd.f32 %v295, %v316
        %v318 = vld [vmem:[%s220] sm:$0xff]
        %v319 = vadd.f32 %v318, %v313
        %320 = vst [vmem:[%s220] sm:$0xff] %v319
        %s321 = scalar_lea.vmem %s220, 16 [#allocation7]
        %v322 = vld [vmem:[%s321] sm:$0xff]
        %v323 = vadd.f32 %v322, %v317
        %324 = vst [vmem:[%s321] sm:$0xff] %v323
        %s325 = scalar_lea.vmem %s186, 8 [#allocation2]
        %v326 = vld [vmem:[%s325] sm:$0x1]
        %s327 = scalar_lea.vmem %s186, 24 [#allocation2]
        %v328 = vld [vmem:[%s327] sm:$0x1]
        %v329 = vld [vmem:[%s195] sm:$0xff]
        %v330 = vld [vmem:[%s234] sm:$0xff]
        %v331 = vlaneseq
        %v332 = vshrl.u32 %v331, 7
        %v333 = vsub.s32 0, %v332
        %v334 = vrot.slane %v326, %v333
        %v335 = vmul.f32 %v334, %v329
        %v336 = vlaneseq
        %v337 = vshrl.u32 %v336, 7
        %v338 = vsub.s32 0, %v337
        %v339 = vrot.slane %v328, %v338
        %v340 = vmul.f32 %v339, %v330
        %v341 = vsub.f32 %v335, %v340
        %v342 = vadd.f32 %v341, 0.0
        %v343 = vmul.f32 %v334, %v330
        %v344 = vmul.f32 %v339, %v329
        %v345 = vadd.f32 %v343, %v344
        %v346 = vadd.f32 %v345, 0.0
        %v347 = vld [vmem:[%s325 + $0x1] sm:$0x1]
        %v348 = vld [vmem:[%s327 + $0x1] sm:$0x1]
        %v349 = vld [vmem:[%s254] sm:$0xff]
        %v350 = vld [vmem:[%s256] sm:$0xff]
        %v351 = vlaneseq
        %v352 = vshrl.u32 %v351, 7
        %v353 = vsub.s32 0, %v352
        %v354 = vrot.slane %v347, %v353
        %v355 = vmul.f32 %v354, %v349
        %v356 = vlaneseq
        %v357 = vshrl.u32 %v356, 7
        %v358 = vsub.s32 0, %v357
        %v359 = vrot.slane %v348, %v358
        %v360 = vmul.f32 %v359, %v350
        %v361 = vsub.f32 %v355, %v360
        %v362 = vadd.f32 %v342, %v361
        %v363 = vmul.f32 %v354, %v350
        %v364 = vmul.f32 %v359, %v349
        %v365 = vadd.f32 %v363, %v364
        %v366 = vadd.f32 %v346, %v365
        %v367 = vld [vmem:[%s325 + $0x2] sm:$0x1]
        %v368 = vld [vmem:[%s327 + $0x2] sm:$0x1]
        %v369 = vld [vmem:[%s276] sm:$0xff]
        %v370 = vld [vmem:[%s278] sm:$0xff]
        %v371 = vlaneseq
        %v372 = vshrl.u32 %v371, 7
        %v373 = vsub.s32 0, %v372
        %v374 = vrot.slane %v367, %v373
        %v375 = vmul.f32 %v374, %v369
        %v376 = vlaneseq
        %v377 = vshrl.u32 %v376, 7
        %v378 = vsub.s32 0, %v377
        %v379 = vrot.slane %v368, %v378
        %v380 = vmul.f32 %v379, %v370
        %v381 = vsub.f32 %v375, %v380
        %v382 = vadd.f32 %v362, %v381
        %v383 = vmul.f32 %v374, %v370
        %v384 = vmul.f32 %v379, %v369
        %v385 = vadd.f32 %v383, %v384
        %v386 = vadd.f32 %v366, %v385
        %v387 = vld [vmem:[%s325 + $0x3] sm:$0x1]
        %v388 = vld [vmem:[%s327 + $0x3] sm:$0x1]
        %v389 = vld [vmem:[%s298] sm:$0xff]
        %v390 = vld [vmem:[%s300] sm:$0xff]
        %v391 = vlaneseq
        %v392 = vshrl.u32 %v391, 7
        %v393 = vsub.s32 0, %v392
        %v394 = vrot.slane %v387, %v393
        %v395 = vmul.f32 %v394, %v389
        %v396 = vlaneseq
        %v397 = vshrl.u32 %v396, 7
        %v398 = vsub.s32 0, %v397
        %v399 = vrot.slane %v388, %v398
        %v400 = vmul.f32 %v399, %v390
        %v401 = vsub.f32 %v395, %v400
        %v402 = vadd.f32 %v382, %v401
        %v403 = vmul.f32 %v394, %v390
        %v404 = vmul.f32 %v399, %v389
        %v405 = vadd.f32 %v403, %v404
        %v406 = vadd.f32 %v386, %v405
        %s407 = scalar_lea.vmem %s220, 8 [#allocation7]
        %v408 = vld [vmem:[%s407] sm:$0xff]
        %v409 = vadd.f32 %v408, %v402
        %410 = vst [vmem:[%s407] sm:$0xff] %v409
        %s411 = scalar_lea.vmem %s220, 24 [#allocation7]
        %v412 = vld [vmem:[%s411] sm:$0xff]
        %v413 = vadd.f32 %v412, %v406
        %414 = vst [vmem:[%s411] sm:$0xff] %v413
        %s415 = sand.u32 %s98, 1
        %s416 = scalar_lea.sflag [#allocation4], %s415
        %s417 = sand.u32 %s98, 1
        %s418 = smul.addr %s417, 32
        %s419 = scalar_lea.vmem [#allocation7], %s418
        // Predicated region
        $region41: #{tpu_custom_call.1} parent=27 // pred_check
          %p420 = pneg %p108
        $region42: #{tpu_custom_call.1} parent=27 // pred_check_branch
          %422 = sbr.rel (%p420) target = $region44
        $region43: #{tpu_custom_call.1} parent=27 // pred_region
          %s424 = ssub.s32 512, 512
          %425 = vsyncadd %s416, %s424
          %s426 = smul.addr %s26, 128
          %s427 = scalar_lea.hbm %s2, %s426
          %s428 = sshll.u32 %s419, 4
          %s429 = int_to_ptr.vmem [resolvable:$true] %s428
          %434 = dma.vmem_to_hbm [thread:$0]  %s429, 512, %s427, %s416, 128, 256, 8
        $region44: #{tpu_custom_call.1} parent=27 // pred_fallthru
          _
      $region28: #{tpu_custom_call.1} parent=5 // pred_fallthru
        _
      %p435 = scmp.le.s32.totalorder 2, %s17
      // Predicated region
      $region45: #{tpu_custom_call.1} parent=5 // pred_check
        %p436 = pneg %p435
      $region46: #{tpu_custom_call.1} parent=5 // pred_check_branch
        %438 = sbr.rel (%p436) target = $region48
      $region47: #{tpu_custom_call.1} parent=5 // pred_region
        %s439 = ssub.s32 %s17, 2
        // Predicated region
        $region49: #{tpu_custom_call.1} parent=47 // pred_check
          %p440 = pneg %p114
        $region50: #{tpu_custom_call.1} parent=47 // pred_check_branch
          %442 = sbr.rel (%p440) target = $region52
        $region51: #{tpu_custom_call.1} parent=47 // pred_region
          %s443 = sand.u32 %s99, 1
          %s444 = scalar_lea.sflag [#allocation4], %s443
          %s445 = sand.u32 %s99, 1
          %s446 = smul.addr %s445, 32
          %s447 = scalar_lea.vmem [#allocation7], %s446
          %448 = dma.done %s444, 512
        $region52: #{tpu_custom_call.1} parent=47 // pred_fallthru
          _
      $region48: #{tpu_custom_call.1} parent=5 // pred_fallthru
        _
    $region6: #{tpu_custom_call.1} parent=1 // loop_footer
      %s21 = sadd.s32 1, %s17
    $region7: #{tpu_custom_call.1} parent=1 // loop_footer_branch
      %16 = sbr.rel target = $region3
    $region8: #{tpu_custom_call.1} parent=1 // loop_exit
      _
    %449 = vsyncpa [#allocation3], 1
    %s450 = scalar_lea.sflag [#allocation3], 1
    %451 = vsyncpa %s450, 1
    %452 = vsyncpa [#allocation6], 1
    %s453 = scalar_lea.sflag [#allocation6], 1
    %454 = vsyncpa %s453, 1
    %455 = vsyncpa [#allocation4], 1
    %s456 = scalar_lea.sflag [#allocation4], 1
    %457 = vsyncpa %s456, 1

</llo_original>
